<compile_context>
chip_gen: v6e
topology: v6e:2x2x1
jax: 0.10.0
libtpu: 0.0.40
codegen_flags: <defaults>
</compile_context>

<pallas_src>
import functools

import jax
import jax.numpy as jnp
from jax.experimental import pallas as pl
from jax.experimental.pallas import tpu as pltpu


def _ce_kernel(logits_ref, targets_ref, nll_ref, m_sc, s_sc, t_sc, *,
               num_classes: int, class_tile: int, mask_classes: bool):
    """Process one (TB, TC) logits tile with online-softmax accumulation."""
    j = pl.program_id(1)

    @pl.when(j == 0)
    def _():
        m_sc[...] = jnp.full_like(m_sc, -jnp.inf)
        s_sc[...] = jnp.zeros_like(s_sc)
        t_sc[...] = jnp.zeros_like(t_sc)

    x = logits_ref[...]                                    # (TB, TC) native dtype
    tgt = targets_ref[...]                                 # (TB, 1) int32
    col = jax.lax.broadcasted_iota(jnp.int32, x.shape, 1) + j * class_tile

    # Fused gather of the target logit: one-hot select in the NATIVE dtype
    # (exact — a single value is selected; keeps compare/select on the cheap
    # bf16 VALU path).  Out-of-range / ignore_index targets match no lane.
    t_sc[...] += jnp.sum(jnp.where(col == tgt, x, 0), axis=-1,
                         keepdims=True).astype(jnp.float32)

    # Running max.  max() only selects, so native-dtype max is exact; only the
    # (TB, 1) result is upcast.  Padded class columns (partial last class tile)
    # are masked to -inf.
    xm = jnp.where(col < num_classes, x, -jnp.inf) if mask_classes else x
    m_tile = jnp.max(xm, axis=-1, keepdims=True).astype(jnp.float32)
    m_new = jnp.maximum(m_sc[...], m_tile)

    # Running sum of exp in f32; the upcast is fused into the exp expression.
    e = jnp.exp(x.astype(jnp.float32) - m_new)
    if mask_classes:
        e = jnp.where(col < num_classes, e, 0.0)
    s_sc[...] = s_sc[...] * jnp.exp(m_sc[...] - m_new) \
        + jnp.sum(e, axis=-1, keepdims=True)
    m_sc[...] = m_new

    @pl.when(j == pl.num_programs(1) - 1)
    def _():
        # per-row NLL: logsumexp(x) - x[target]
        nll_ref[...] = (m_sc[...] + jnp.log(s_sc[...])) - t_sc[...]


def _choose_tiles(batch: int, num_classes: int, itemsize: int,
                  tile_b: int | None, tile_c: int | None) -> tuple[int, int]:
    # VMEM budget for the logits stream: 2x double-buffered native-dtype tile
    # plus ~2 f32-sized working copies (upcast/exp temporaries) per element.
    # Kept under vmem_limit_bytes=48 MiB (safe on v7x's 64 MiB physical VMEM).
    budget_bytes = 40 * 1024 * 1024
    bytes_per_elem = 2 * itemsize + 8
    budget_elems = max(8 * 128, budget_bytes // bytes_per_elem)

    # ---- class tile ----
    if tile_c is not None:
        tc = tile_c
    else:
        rows_at_full_c = ((budget_elems // num_classes) // 8) * 8
        if num_classes <= 4096 or rows_at_full_c >= 64:
            tc = num_classes                     # single full-C block (common)
        else:
            # vocab-scale C: tile classes at a multiple of 128, ~128 rows/tile
            tc = max(128, ((budget_elems // 128) // 128) * 128)
    if tc >= num_classes:
        tc = num_classes

    # ---- batch tile ----
    if tile_b is not None:
        tb = tile_b
    else:
        tb = max(8, ((budget_elems // tc) // 8) * 8)
        if tb >= batch:
            if batch > 8:
                # keep >=2 (>=4 for larger batches) batch tiles: pipelining on
                # all chips + megacore sharding of the "parallel" axis on v7x
                want = 4 if batch >= 64 else 2
                tb = max(8, (((batch + want - 1) // want + 7) // 8) * 8)
            else:
                tb = batch                       # tiny batch: one full tile
    return tb, tc


def _row_nll(logits: jax.Array, targets2d: jax.Array,
             tile_b: int | None, tile_c: int | None) -> jax.Array:
    B, C = logits.shape
    tb, tc = _choose_tiles(B, C, jnp.dtype(logits.dtype).itemsize, tile_b, tile_c)
    nb, nc = pl.cdiv(B, tb), pl.cdiv(C, tc)
    mask_classes = (tc < C) and (C % tc != 0)

    kernel = functools.partial(_ce_kernel, num_classes=C, class_tile=tc,
                               mask_classes=mask_classes)
    return pl.pallas_call(
        kernel,
        out_shape=jax.ShapeDtypeStruct((B, 1), jnp.float32),
        grid_spec=pltpu.PrefetchScalarGridSpec(
            num_scalar_prefetch=0,
            grid=(nb, nc),
            in_specs=[
                pl.BlockSpec((tb, tc), lambda i, j: (i, j)),   # logits tile
                pl.BlockSpec((tb, 1), lambda i, j: (i, 0)),    # targets tile
            ],
            out_specs=pl.BlockSpec((tb, 1), lambda i, j: (i, 0)),
            scratch_shapes=[
                pltpu.VMEM((tb, 1), jnp.float32),   # running max
                pltpu.VMEM((tb, 1), jnp.float32),   # running sum of exp
                pltpu.VMEM((tb, 1), jnp.float32),   # gathered target logit
            ],
        ),
        compiler_params=pltpu.CompilerParams(
            dimension_semantics=("parallel", "arbitrary"),
            vmem_limit_bytes=48 * 1024 * 1024,
        ),
    )(logits, targets2d)


def cross_entropy_loss(logits: jax.Array, targets: jax.Array, *,
                       tile_b: int | None = None, tile_c: int | None = None,
                       ignore_index: int = -100) -> jax.Array:
    """logits: (B, C) float (any dtype), targets: (B,) int -> scalar f32 loss."""
    B, C = logits.shape
    t32 = targets.astype(jnp.int32)
    row_nll = _row_nll(logits, t32.reshape(B, 1), tile_b, tile_c)[:, 0]  # (B,)

    # torch default: rows with target == ignore_index are excluded from the mean
    valid = (t32 != ignore_index)
    n_valid = jnp.sum(valid.astype(jnp.float32))
    return jnp.sum(jnp.where(valid, row_nll, 0.0)) / n_valid


if __name__ == "__main__":
    key = jax.random.PRNGKey(0)
    k1, k2, k3, k4, k5, k6 = jax.random.split(key, 6)

    def ref_ce(logits, targets, ignore_index=-100):
        logp = jax.nn.log_softmax(logits.astype(jnp.float32), axis=-1)
        idx = jnp.clip(targets, 0, logits.shape[-1] - 1)
        nll = -logp[jnp.arange(logits.shape[0]), idx]
        valid = targets != ignore_index
        return jnp.sum(jnp.where(valid, nll, 0.0)) / jnp.sum(valid.astype(jnp.float32))

    # --- small f32 case ---
    B, C = 8, 32
    logits = jax.random.normal(k1, (B, C), dtype=jnp.float32)
    targets = jax.random.randint(k2, (B,), 0, C, dtype=jnp.int32)
    loss = cross_entropy_loss(logits, targets)
    jax.block_until_ready(loss)
    assert jnp.allclose(loss, ref_ce(logits, targets), atol=1e-4, rtol=1e-4), \
        (loss, ref_ce(logits, targets))

    # --- bf16 logits fed in native dtype (kernel upcasts internally) ---
    logits_bf16 = logits.astype(jnp.bfloat16)
    loss_bf16 = cross_entropy_loss(logits_bf16, targets)
    jax.block_until_ready(loss_bf16)
    assert jnp.allclose(loss_bf16, ref_ce(logits_bf16, targets),
                        atol=1e-4, rtol=1e-4), (loss_bf16, ref_ce(logits_bf16, targets))

    # --- uneven batch (B % TB != 0): partial last batch tile ---
    B2, C2 = 20, 32
    logits2 = jax.random.normal(k3, (B2, C2), dtype=jnp.float32)
    targets2 = jax.random.randint(k4, (B2,), 0, C2, dtype=jnp.int32)
    loss2 = cross_entropy_loss(logits2, targets2, tile_b=8)
    jax.block_until_ready(loss2)
    assert jnp.allclose(loss2, ref_ce(logits2, targets2), atol=1e-4, rtol=1e-4), \
        (loss2, ref_ce(logits2, targets2))

    # --- class-tiled online-softmax path (nc > 1, partial last class tile) ---
    B3, C3 = 16, 320
    logits3 = jax.random.normal(k5, (B3, C3), dtype=jnp.float32)
    targets3 = jax.random.randint(k6, (B3,), 0, C3, dtype=jnp.int32)
    loss3 = cross_entropy_loss(logits3, targets3, tile_b=8, tile_c=128)
    jax.block_until_ready(loss3)
    assert jnp.allclose(loss3, ref_ce(logits3, targets3), atol=1e-4, rtol=1e-4), \
        (loss3, ref_ce(logits3, targets3))

    # --- ignore_index=-100 rows excluded from the mean (torch default) ---
    targets_ign = targets.at[0].set(-100)
    loss_ign = cross_entropy_loss(logits, targets_ign)
    jax.block_until_ready(loss_ign)
    assert jnp.allclose(loss_ign, ref_ce(logits, targets_ign),
                        atol=1e-4, rtol=1e-4), (loss_ign, ref_ce(logits, targets_ign))

    print("KERNEL_OK")
</pallas_src>

<mosaic_0001>
module attributes {stable_mosaic.version = 11 : i64} {
  func.func @_ce_kernel(%arg0: i32, %arg1: i32, %arg2: memref<8x32xf32, #tpu.memory_space<vmem>>, %arg3: memref<8x1xi32, #tpu.memory_space<vmem>>, %arg4: memref<8x1xf32, #tpu.memory_space<vmem>>, %arg5: memref<8x1xf32, #tpu.memory_space<vmem>>, %arg6: memref<8x1xf32, #tpu.memory_space<vmem>>, %arg7: memref<8x1xf32, #tpu.memory_space<vmem>>) attributes {dimension_semantics = [#tpu.dimension_semantics<parallel>, #tpu.dimension_semantics<arbitrary>], iteration_bounds = array<i64: 1, 1>, scalar_prefetch = 0 : i64, scratch_operands = 3 : i64, tpu.core_type = #tpu.core_type<tc>, window_params = [{transform_indices = @transform_0, window_bounds = array<i64: 8, 32>}, {transform_indices = @transform_1, window_bounds = array<i64: 8, 1>}, {transform_indices = @transform_2, window_bounds = array<i64: 8, 1>}]} {
    %c0_i32 = arith.constant 0 : i32
    %0 = arith.cmpi eq, %arg1, %c0_i32 : i32
    %1 = arith.extui %0 : i1 to i32
    %c0_i32_0 = arith.constant 0 : i32
    %2 = arith.cmpi ne, %1, %c0_i32_0 : i32
    scf.if %2 {
      %cst_23 = arith.constant 0xFF800000 : f32
      %39 = vector.broadcast %cst_23 : f32 to vector<8x1xf32>
      %c0_24 = arith.constant 0 : index
      %c0_25 = arith.constant 0 : index
      %40 = vector.load %arg5[%c0_24, %c0_25] : memref<8x1xf32, #tpu.memory_space<vmem>>, vector<8x1xf32>
      tpu.vector_store %arg5[%c0_24, %c0_25], %39 {strides = array<i32>} : memref<8x1xf32, #tpu.memory_space<vmem>>, vector<8x1xf32>,
      %cst_26 = arith.constant 0.000000e+00 : f32
      %41 = vector.broadcast %cst_26 : f32 to vector<8x1xf32>
      %c0_27 = arith.constant 0 : index
      %c0_28 = arith.constant 0 : index
      %42 = vector.load %arg6[%c0_27, %c0_28] : memref<8x1xf32, #tpu.memory_space<vmem>>, vector<8x1xf32>
      tpu.vector_store %arg6[%c0_27, %c0_28], %41 {strides = array<i32>} : memref<8x1xf32, #tpu.memory_space<vmem>>, vector<8x1xf32>,
      %cst_29 = arith.constant 0.000000e+00 : f32
      %43 = vector.broadcast %cst_29 : f32 to vector<8x1xf32>
      %c0_30 = arith.constant 0 : index
      %c0_31 = arith.constant 0 : index
      %44 = vector.load %arg7[%c0_30, %c0_31] : memref<8x1xf32, #tpu.memory_space<vmem>>, vector<8x1xf32>
      tpu.vector_store %arg7[%c0_30, %c0_31], %43 {strides = array<i32>} : memref<8x1xf32, #tpu.memory_space<vmem>>, vector<8x1xf32>,
    } else {
    }
    %c0 = arith.constant 0 : index
    %c0_1 = arith.constant 0 : index
    %3 = vector.load %arg2[%c0, %c0_1] : memref<8x32xf32, #tpu.memory_space<vmem>>, vector<8x32xf32>
    %c0_2 = arith.constant 0 : index
    %c0_3 = arith.constant 0 : index
    %4 = vector.load %arg3[%c0_2, %c0_3] : memref<8x1xi32, #tpu.memory_space<vmem>>, vector<8x1xi32>
    %5 = tpu.iota {dimensions = array<i32: 1>} : vector<8x32xi32>
    %c32_i32 = arith.constant 32 : i32
    %6 = arith.muli %arg1, %c32_i32 : i32
    %7 = vector.broadcast %6 : i32 to vector<8x32xi32>
    %8 = arith.addi %5, %7 : vector<8x32xi32>
    %c0_4 = arith.constant 0 : index
    %c0_5 = arith.constant 0 : index
    %9 = vector.load %arg7[%c0_4, %c0_5] : memref<8x1xf32, #tpu.memory_space<vmem>>, vector<8x1xf32>
    %10 = vector.broadcast %4 : vector<8x1xi32> to vector<8x32xi32>
    %11 = arith.cmpi eq, %8, %10 : vector<8x32xi32>
    %c0_i32_6 = arith.constant 0 : i32
    %12 = arith.sitofp %c0_i32_6 : i32 to f32
    %13 = vector.broadcast %12 : f32 to vector<8x32xf32>
    %14 = arith.select %11, %3, %13 : vector<8x32xi1>, vector<8x32xf32>
    %cst = arith.constant dense<0.000000e+00> : vector<8xf32>
    %15 = vector.multi_reduction <add>, %14, %cst [1] : vector<8x32xf32> to vector<8xf32>
    %16 = vector.shape_cast %15 : vector<8xf32> to vector<8x1xf32>
    %17 = arith.addf %9, %16 : vector<8x1xf32>
    %c0_7 = arith.constant 0 : index
    %c0_8 = arith.constant 0 : index
    %18 = vector.load %arg7[%c0_7, %c0_8] : memref<8x1xf32, #tpu.memory_space<vmem>>, vector<8x1xf32>
    tpu.vector_store %arg7[%c0_7, %c0_8], %17 {strides = array<i32>} : memref<8x1xf32, #tpu.memory_space<vmem>>, vector<8x1xf32>,
    %cst_9 = arith.constant dense<0xFF800000> : vector<8xf32>
    %19 = vector.multi_reduction <maximumf>, %3, %cst_9 [1] : vector<8x32xf32> to vector<8xf32>
    %20 = vector.shape_cast %19 : vector<8xf32> to vector<8x1xf32>
    %c0_10 = arith.constant 0 : index
    %c0_11 = arith.constant 0 : index
    %21 = vector.load %arg5[%c0_10, %c0_11] : memref<8x1xf32, #tpu.memory_space<vmem>>, vector<8x1xf32>
    %22 = arith.maximumf %21, %20 : vector<8x1xf32>
    %23 = vector.broadcast %22 : vector<8x1xf32> to vector<8x32xf32>
    %24 = arith.subf %3, %23 : vector<8x32xf32>
    %25 = math.exp %24 : vector<8x32xf32>
    %c0_12 = arith.constant 0 : index
    %c0_13 = arith.constant 0 : index
    %26 = vector.load %arg6[%c0_12, %c0_13] : memref<8x1xf32, #tpu.memory_space<vmem>>, vector<8x1xf32>
    %c0_14 = arith.constant 0 : index
    %c0_15 = arith.constant 0 : index
    %27 = vector.load %arg5[%c0_14, %c0_15] : memref<8x1xf32, #tpu.memory_space<vmem>>, vector<8x1xf32>
    %28 = arith.subf %27, %22 : vector<8x1xf32>
    %29 = math.exp %28 : vector<8x1xf32>
    %30 = arith.mulf %26, %29 : vector<8x1xf32>
    %cst_16 = arith.constant dense<0.000000e+00> : vector<8xf32>
    %31 = vector.multi_reduction <add>, %25, %cst_16 [1] : vector<8x32xf32> to vector<8xf32>
    %32 = vector.shape_cast %31 : vector<8xf32> to vector<8x1xf32>
    %33 = arith.addf %30, %32 : vector<8x1xf32>
    %c0_17 = arith.constant 0 : index
    %c0_18 = arith.constant 0 : index
    %34 = vector.load %arg6[%c0_17, %c0_18] : memref<8x1xf32, #tpu.memory_space<vmem>>, vector<8x1xf32>
    tpu.vector_store %arg6[%c0_17, %c0_18], %33 {strides = array<i32>} : memref<8x1xf32, #tpu.memory_space<vmem>>, vector<8x1xf32>,
    %c0_19 = arith.constant 0 : index
    %c0_20 = arith.constant 0 : index
    %35 = vector.load %arg5[%c0_19, %c0_20] : memref<8x1xf32, #tpu.memory_space<vmem>>, vector<8x1xf32>
    tpu.vector_store %arg5[%c0_19, %c0_20], %22 {strides = array<i32>} : memref<8x1xf32, #tpu.memory_space<vmem>>, vector<8x1xf32>,
    %c0_i32_21 = arith.constant 0 : i32
    %36 = arith.cmpi eq, %arg1, %c0_i32_21 : i32
    %37 = arith.extui %36 : i1 to i32
    %c0_i32_22 = arith.constant 0 : i32
    %38 = arith.cmpi ne, %37, %c0_i32_22 : i32
    scf.if %38 {
      %c0_23 = arith.constant 0 : index
      %c0_24 = arith.constant 0 : index
      %39 = vector.load %arg5[%c0_23, %c0_24] : memref<8x1xf32, #tpu.memory_space<vmem>>, vector<8x1xf32>
      %c0_25 = arith.constant 0 : index
      %c0_26 = arith.constant 0 : index
      %40 = vector.load %arg6[%c0_25, %c0_26] : memref<8x1xf32, #tpu.memory_space<vmem>>, vector<8x1xf32>
      %41 = math.log %40 : vector<8x1xf32>
      %42 = arith.addf %39, %41 : vector<8x1xf32>
      %c0_27 = arith.constant 0 : index
      %c0_28 = arith.constant 0 : index
      %43 = vector.load %arg7[%c0_27, %c0_28] : memref<8x1xf32, #tpu.memory_space<vmem>>, vector<8x1xf32>
      %44 = arith.subf %42, %43 : vector<8x1xf32>
      %c0_29 = arith.constant 0 : index
      %c0_30 = arith.constant 0 : index
      %45 = vector.load %arg4[%c0_29, %c0_30] : memref<8x1xf32, #tpu.memory_space<vmem>>, vector<8x1xf32>
      tpu.vector_store %arg4[%c0_29, %c0_30], %44 {strides = array<i32>} : memref<8x1xf32, #tpu.memory_space<vmem>>, vector<8x1xf32>,
    } else {
    }
    return
  }
  func.func @transform_0(%arg0: i32, %arg1: i32) -> (i32, i32) {
    %c0_i32 = arith.constant 0 : i32
    return %arg0, %arg1 : i32, i32
  }
  func.func @transform_1(%arg0: i32, %arg1: i32) -> (i32, i32) {
    %c0_i32 = arith.constant 0 : i32
    %c0_i32_0 = arith.constant 0 : i32
    return %arg0, %c0_i32 : i32, i32
  }
  func.func @transform_2(%arg0: i32, %arg1: i32) -> (i32, i32) {
    %c0_i32 = arith.constant 0 : i32
    %c0_i32_0 = arith.constant 0 : i32
    return %arg0, %c0_i32 : i32, i32
  }
}

</mosaic_0001>

<llo_original>
// kernel: tpu_custom_call.1
$region0: #{tpu_custom_call.1}
  #allocation0 [shape = 'u32[]', space=smem, size = 0x4, offset = 0x4, fixed_abs, tag = 'smem constant byte address 0x4 - core index']
  #allocation1 [shape = 'u32[144,128]{1,0:T(1,128)}', space=vmem, size = 0x12000, scoped, tag = 'internal scratch']
  #allocation2 [shape = 'f32[8,1]{1,0:T(8,128)}', space=vmem, size = 0x1000, scoped, tag = 'scratch operand']
  #allocation3 [shape = 'f32[8,1]{1,0:T(8,128)}', space=vmem, size = 0x1000, scoped, tag = 'scratch operand']
  #allocation4 [shape = 'f32[8,1]{1,0:T(8,128)}', space=vmem, size = 0x1000, scoped, tag = 'scratch operand']
  %s0 = inlined_call_operand.vmem [shape: f32[8,32], index: 0, kind: input, shape index: {}]
  %s1 = inlined_call_operand.vmem [shape: s32[8,1], index: 1, kind: input, shape index: {}]
  %s2 = inlined_call_operand.vmem [shape: f32[8,1], index: 2, kind: output, shape index: {}]
  %s3 = sld [smem:[#allocation0]]
  $region26: #{tpu_custom_call.1} parent=0
    _
  %s5 = ssub.s32 1, %s3
  %s6 = scalar_select 0, %s5, %s3
  // Predicated region
  $region2: #{tpu_custom_call.1} parent=0 // pred_check
    _
  $region3: #{tpu_custom_call.1} parent=0 // pred_check_branch
    %8 = sbr.rel (0) target = $region5
  $region4: #{tpu_custom_call.1} parent=0 // pred_region
    _
  $region5: #{tpu_custom_call.1} parent=0 // pred_fallthru
    _
  // Predicated region
  $region6: #{tpu_custom_call.1} parent=0 // pred_check
    _
  $region7: #{tpu_custom_call.1} parent=0 // pred_check_branch
    %10 = sbr.rel (0) target = $region9
  $region8: #{tpu_custom_call.1} parent=0 // pred_region
    _
  $region9: #{tpu_custom_call.1} parent=0 // pred_fallthru
    _
  %p11 = scmp.eq.s32.totalorder 0, 0
  // Predicated region
  $region10: #{tpu_custom_call.1} parent=0 // pred_check
    %p12 = pneg %p11
  $region11: #{tpu_custom_call.1} parent=0 // pred_check_branch
    %14 = sbr.rel (%p12) target = $region13
  $region12: #{tpu_custom_call.1} parent=0 // pred_region
    %vm15 = vcmask 7168
    %16 = vst.msk [vmem:[#allocation2] sm:$0xff] %vm15, -inf
    %17 = vst.msk [vmem:[#allocation3] sm:$0xff] %vm15, 0.0
    %18 = vst.msk [vmem:[#allocation4] sm:$0xff] %vm15, 0.0
  $region13: #{tpu_custom_call.1} parent=0 // pred_fallthru
    _
  %v19 = vld [vmem:[%s0] sm:$0xff]
  %v20 = vld [vmem:[%s1] sm:$0xff]
  %v21 = vlaneseq
  %v22 = vand.u32 %v21, 127
  %s23 = smul.u32 0, 32
  %v24 = vstv %s23
  %v25 = vadd.s32 %v22, %v24
  %v26 = vld [vmem:[#allocation4] sm:$0xff]
  %27 = vset.pattern.permute.xlu0 0
  %28 = vperm.xlu0 %27, %v20
  %v29 = vpop.permute.xlu0 %28
  %vm30 = vcmp.eq.s32.totalorder %v25, %v29
  %v31 = vsel %vm30, %v19, 0.0
  %vm32 = vcmask 261120
  %v33 = vsel %vm32, %v31, 0.0
  %34 = vadd.xlane.f32.xlu0 %v33
  %v35 = vpop.xlane.xlu0 %34
  %v36 = vadd.f32 %v26, %v35
  %vm37 = vcmask 7168
  %38 = vst.msk [vmem:[#allocation4] sm:$0xff] %vm37, %v36
  %v39 = vsel %vm32, %v19, -inf
  %40 = vmax.xlane.f32.xlu0 %v39
  %v41 = vpop.xlane.xlu0 %40
  %v42 = vld [vmem:[#allocation2] sm:$0xff]
  %v43 = vmax.f32 %v42, %v41
  %45 = vset.pattern.permute.xlu0 0
  %46 = vperm.xlu0 %45, %v43
  %v47 = vpop.permute.xlu0 %46
  %v49 = vsub.f32 %v19, %v47
  %v50 = vmul.f32 %v49, 1.442695
  %v51 = vpow.pop %v50
  %v52 = vld [vmem:[#allocation3] sm:$0xff]
  %v53 = vsub.f32 %v42, %v43
  %v54 = vmul.f32 %v53, 1.442695
  %v55 = vpow.pop %v54
  %v56 = vmul.f32 %v52, %v55
  %v57 = vsel %vm32, %v51, 0.0
  %58 = vadd.xlane.f32.xlu0 %v57
  %v59 = vpop.xlane.xlu0 %58
  %v60 = vadd.f32 %v56, %v59
  %61 = vst.msk [vmem:[#allocation3] sm:$0xff] %vm37, %v60
  %62 = vst.msk [vmem:[#allocation2] sm:$0xff] %vm37, %v43
  // Predicated region
  $region14: #{tpu_custom_call.1} parent=0 // pred_check
    %p63 = pneg %p11
  $region15: #{tpu_custom_call.1} parent=0 // pred_check_branch
    %65 = sbr.rel (%p63) target = $region17
  $region16: #{tpu_custom_call.1} parent=0 // pred_region
    %v66 = vld [vmem:[#allocation2] sm:$0xff]
    %v67 = vld [vmem:[#allocation3] sm:$0xff]
    %v68 = vlog2.pop %v67
    %v69 = vmul.f32 %v68, 0.6931472
    %v70 = vadd.f32 %v66, %v69
    %v71 = vld [vmem:[#allocation4] sm:$0xff]
    %v72 = vsub.f32 %v70, %v71
    %73 = vst.msk [vmem:[%s2] sm:$0xff] %vm37, %v72
  $region17: #{tpu_custom_call.1} parent=0 // pred_fallthru
    _
  // Predicated region
  $region18: #{tpu_custom_call.1} parent=0 // pred_check
    _
  $region19: #{tpu_custom_call.1} parent=0 // pred_check_branch
    %75 = sbr.rel (0) target = $region21
  $region20: #{tpu_custom_call.1} parent=0 // pred_region
    _
  $region21: #{tpu_custom_call.1} parent=0 // pred_fallthru
    _
  // Predicated region
  $region22: #{tpu_custom_call.1} parent=0 // pred_check
    _
  $region23: #{tpu_custom_call.1} parent=0 // pred_check_branch
    %77 = sbr.rel (0) target = $region25
  $region24: #{tpu_custom_call.1} parent=0 // pred_region
    _
  $region25: #{tpu_custom_call.1} parent=0 // pred_fallthru
    _

</llo_original>
